<compile_context>
chip_gen: v7x
topology: tpu7x:2x2x1
jax: 0.10.0
libtpu: 0.0.40
codegen_flags: <defaults>
</compile_context>

<pallas_src>
import jax
import jax.numpy as jnp
from jax.experimental import pallas as pl
from jax.experimental.pallas import tpu as pltpu


def _round_up(v, m):
    return ((v + m - 1) // m) * m


_INV_SQRT2 = 0.7071067811865476


# -----------------------------------------------------------------------------
# Kernel A: transposed ("columns") layout — used when C_out < 128.
#   xT tile : (C_in, tn)     big N axis on lanes (dense loads)
#   oT tile : (C_out, tn)    big N axis on lanes (dense, unmasked stores)
# -----------------------------------------------------------------------------
def _mlp_cols_kernel(xT_ref, w1T_ref, b1_ref, w2T_ref, b2_ref, oT_ref):
    # native-dtype matmul, f32 accumulate
    h = jnp.dot(w1T_ref[...], xT_ref[...], preferred_element_type=jnp.float32)
    h = h + b1_ref[...].astype(jnp.float32)                    # (hidden, tn)
    # exact (erf) GELU on the f32 accumulator — matches torch.nn.GELU default
    h = 0.5 * h * (1.0 + jax.lax.erf(h * jnp.float32(_INV_SQRT2)))
    y = jnp.dot(w2T_ref[...], h.astype(w2T_ref.dtype),
                preferred_element_type=jnp.float32)
    y = y + b2_ref[...].astype(jnp.float32)                    # (C_out, tn)
    oT_ref[...] = y.astype(oT_ref.dtype)


# -----------------------------------------------------------------------------
# Kernel B: row-streaming layout — used when channels are already lane-dense.
#   x tile : (tm, C_in), out tile : (tm, C_out); weights resident in VMEM.
# -----------------------------------------------------------------------------
def _mlp_rows_kernel(x_ref, w1_ref, b1_ref, w2_ref, b2_ref, o_ref):
    h = jnp.dot(x_ref[...], w1_ref[...], preferred_element_type=jnp.float32)
    h = h + b1_ref[...].astype(jnp.float32)                    # (tm, hidden)
    h = 0.5 * h * (1.0 + jax.lax.erf(h * jnp.float32(_INV_SQRT2)))
    y = jnp.dot(h.astype(w2_ref.dtype), w2_ref[...],
                preferred_element_type=jnp.float32)
    y = y + b2_ref[...].astype(jnp.float32)                    # (tm, C_out)
    o_ref[...] = y.astype(o_ref.dtype)


def mlp_heat_forward(x, w1, b1, w2, b2, *, tile_rows=512, tile_cols=512):
    """Mlp_Heat forward, channels-last.

    x  : (B, H, W, C_in)
    w1 : (C_in, hidden)   (nn.Linear fc1 weight, pre-transposed to (in, out))
    b1 : (hidden,)
    w2 : (hidden, C_out)
    b2 : (C_out,)
    returns (B, H, W, C_out)
    """
    B, H, W, C_in = x.shape
    hidden = w1.shape[1]
    C_out = w2.shape[1]
    N = B * H * W
    x2d = x.reshape(N, C_in)

    compiler_params = pltpu.CompilerParams(
        dimension_semantics=("parallel",),
        vmem_limit_bytes=64 * 1024 * 1024,
    )

    if C_out < 128:
        # Lane-sparse channel count: run in a transposed layout so the large N
        # axis maps to the 128-wide lane dimension for both loads and stores.
        xT = x2d.T                      # (C_in, N)
        w1T = w1.T                      # (hidden, C_in)
        w2T = w2.T                      # (C_out, hidden)
        b1c = b1.reshape(hidden, 1)
        b2c = b2.reshape(C_out, 1)

        tn = tile_cols
        if N <= tn:
            # keep >= 2 grid steps so v7x megacore can shard across both TCs
            tn = max(128, _round_up(pl.cdiv(N, 2), 128))
        grid = (pl.cdiv(N, tn),)

        outT = pl.pallas_call(
            _mlp_cols_kernel,
            out_shape=jax.ShapeDtypeStruct((C_out, N), x.dtype),
            grid_spec=pltpu.PrefetchScalarGridSpec(
                num_scalar_prefetch=0,
                grid=grid,
                in_specs=[
                    pl.BlockSpec((C_in, tn), lambda j: (0, j)),
                    pl.BlockSpec((hidden, C_in), lambda j: (0, 0)),
                    pl.BlockSpec((hidden, 1), lambda j: (0, 0)),
                    pl.BlockSpec((C_out, hidden), lambda j: (0, 0)),
                    pl.BlockSpec((C_out, 1), lambda j: (0, 0)),
                ],
                out_specs=pl.BlockSpec((C_out, tn), lambda j: (0, j)),
            ),
            compiler_params=compiler_params,
        )(xT, w1T, b1c, w2T, b2c)
        out2d = outT.T
    else:
        # Channels already lane-dense: stream large row tiles, weights resident.
        # TODO(synk): for very large C/hidden on v7x (64 MiB VMEM) add a
        # hidden-chunk grid axis with an f32 accumulator instead of holding
        # full w1/w2 resident.
        tm = tile_rows
        if N <= tm:
            tm = max(8, _round_up(pl.cdiv(N, 2), 8))
        grid = (pl.cdiv(N, tm),)
        b1r = b1.reshape(1, hidden)
        b2r = b2.reshape(1, C_out)

        out2d = pl.pallas_call(
            _mlp_rows_kernel,
            out_shape=jax.ShapeDtypeStruct((N, C_out), x.dtype),
            grid_spec=pltpu.PrefetchScalarGridSpec(
                num_scalar_prefetch=0,
                grid=grid,
                in_specs=[
                    pl.BlockSpec((tm, C_in), lambda i: (i, 0)),
                    pl.BlockSpec((C_in, hidden), lambda i: (0, 0)),
                    pl.BlockSpec((1, hidden), lambda i: (0, 0)),
                    pl.BlockSpec((hidden, C_out), lambda i: (0, 0)),
                    pl.BlockSpec((1, C_out), lambda i: (0, 0)),
                ],
                out_specs=pl.BlockSpec((tm, C_out), lambda i: (i, 0)),
            ),
            compiler_params=compiler_params,
        )(x2d, w1, b1r, w2, b2r)

    return out2d.reshape(B, H, W, C_out)


def _reference(x, w1, b1, w2, b2):
    x2 = x.astype(jnp.float32)
    h = x2 @ w1.astype(jnp.float32) + b1.astype(jnp.float32)
    h = jax.nn.gelu(h, approximate=False)
    y = h @ w2.astype(jnp.float32) + b2.astype(jnp.float32)
    return y.astype(x.dtype)


if __name__ == "__main__":
    key = jax.random.PRNGKey(0)

    # --- test 1: small channel count (C=4) -> lane-dense transposed path ----
    k_x, k_w1, k_b1, k_w2, k_b2 = jax.random.split(key, 5)
    B, H, W = 2, 16, 16
    in_f, hid_f, out_f = 4, 32, 4   # out_features defaults to in_features

    x = jax.random.normal(k_x, (B, H, W, in_f), dtype=jnp.float32)
    w1 = jax.random.normal(k_w1, (in_f, hid_f), jnp.float32) * 0.1
    b1 = jax.random.normal(k_b1, (hid_f,), jnp.float32) * 0.1
    w2 = jax.random.normal(k_w2, (hid_f, out_f), jnp.float32) * 0.1
    b2 = jax.random.normal(k_b2, (out_f,), jnp.float32) * 0.1

    out = jax.block_until_ready(mlp_heat_forward(x, w1, b1, w2, b2))
    ref = _reference(x, w1, b1, w2, b2)
    assert out.shape == (B, H, W, out_f)
    assert jnp.allclose(out, ref, atol=1e-4, rtol=1e-4), "mismatch (cols path)"

    # --- test 2: lane-dense channels (C=128) -> row-streaming path ----------
    k2 = jax.random.PRNGKey(1)
    k_x, k_w1, k_b1, k_w2, k_b2 = jax.random.split(k2, 5)
    B2, H2, W2 = 1, 8, 8
    in2, hid2, out2 = 128, 256, 128

    x_b = jax.random.normal(k_x, (B2, H2, W2, in2), dtype=jnp.float32)
    w1_b = jax.random.normal(k_w1, (in2, hid2), jnp.float32) * 0.05
    b1_b = jax.random.normal(k_b1, (hid2,), jnp.float32) * 0.05
    w2_b = jax.random.normal(k_w2, (hid2, out2), jnp.float32) * 0.05
    b2_b = jax.random.normal(k_b2, (out2,), jnp.float32) * 0.05

    out_b = jax.block_until_ready(mlp_heat_forward(x_b, w1_b, b1_b, w2_b, b2_b))
    ref_b = _reference(x_b, w1_b, b1_b, w2_b, b2_b)
    assert out_b.shape == (B2, H2, W2, out2)
    assert jnp.allclose(out_b, ref_b, atol=1e-3, rtol=1e-3), "mismatch (rows path)"

    print("KERNEL_OK")
</pallas_src>

<mosaic_0001>
module attributes {stable_mosaic.version = 11 : i64} {
  func.func @_mlp_cols_kernel(%arg0: i32, %arg1: memref<4x256xf32, #tpu.memory_space<vmem>>, %arg2: memref<32x4xf32, #tpu.memory_space<vmem>>, %arg3: memref<32x1xf32, #tpu.memory_space<vmem>>, %arg4: memref<4x32xf32, #tpu.memory_space<vmem>>, %arg5: memref<4x1xf32, #tpu.memory_space<vmem>>, %arg6: memref<4x256xf32, #tpu.memory_space<vmem>>) attributes {dimension_semantics = [#tpu.dimension_semantics<parallel>], iteration_bounds = array<i64: 2>, scalar_prefetch = 0 : i64, scratch_operands = 0 : i64, tpu.core_type = #tpu.core_type<tc>, window_params = [{transform_indices = @transform_0, window_bounds = array<i64: 4, 256>}, {pipeline_mode = #tpu.pipeline_mode<synchronous>, transform_indices = @transform_1, window_bounds = array<i64: 32, 4>}, {pipeline_mode = #tpu.pipeline_mode<synchronous>, transform_indices = @transform_2, window_bounds = array<i64: 32, 1>}, {pipeline_mode = #tpu.pipeline_mode<synchronous>, transform_indices = @transform_3, window_bounds = array<i64: 4, 32>}, {pipeline_mode = #tpu.pipeline_mode<synchronous>, transform_indices = @transform_4, window_bounds = array<i64: 4, 1>}, {transform_indices = @transform_5, window_bounds = array<i64: 4, 256>}]} {
    %c0 = arith.constant 0 : index
    %c0_0 = arith.constant 0 : index
    %0 = vector.load %arg2[%c0, %c0_0] : memref<32x4xf32, #tpu.memory_space<vmem>>, vector<32x4xf32>
    %c0_1 = arith.constant 0 : index
    %c0_2 = arith.constant 0 : index
    %1 = vector.load %arg1[%c0_1, %c0_2] : memref<4x256xf32, #tpu.memory_space<vmem>>, vector<4x256xf32>
    %cst = arith.constant dense<0.000000e+00> : vector<32x256xf32>
    %2 = tpu.matmul %0, %1, %cst {dimension_numbers = #tpu.dot_dimension_numbers<[1], [0], [0], [1], [0, 0, 1, 1], [], []>} : vector<32x4xf32>, vector<4x256xf32>, vector<32x256xf32> -> vector<32x256xf32>
    %c0_3 = arith.constant 0 : index
    %c0_4 = arith.constant 0 : index
    %3 = vector.load %arg3[%c0_3, %c0_4] : memref<32x1xf32, #tpu.memory_space<vmem>>, vector<32x1xf32>
    %4 = vector.broadcast %3 : vector<32x1xf32> to vector<32x256xf32>
    %5 = arith.addf %2, %4 : vector<32x256xf32>
    %cst_5 = arith.constant 5.000000e-01 : f32
    %6 = vector.broadcast %cst_5 : f32 to vector<32x256xf32>
    %7 = arith.mulf %6, %5 : vector<32x256xf32>
    %cst_6 = arith.constant 0.707106769 : f32
    %8 = vector.broadcast %cst_6 : f32 to vector<32x256xf32>
    %9 = arith.mulf %5, %8 : vector<32x256xf32>
    %10 = math.erf %9 : vector<32x256xf32>
    %cst_7 = arith.constant 1.000000e+00 : f32
    %11 = vector.broadcast %cst_7 : f32 to vector<32x256xf32>
    %12 = arith.addf %11, %10 : vector<32x256xf32>
    %13 = arith.mulf %7, %12 : vector<32x256xf32>
    %c0_8 = arith.constant 0 : index
    %c0_9 = arith.constant 0 : index
    %14 = vector.load %arg4[%c0_8, %c0_9] : memref<4x32xf32, #tpu.memory_space<vmem>>, vector<4x32xf32>
    %cst_10 = arith.constant dense<0.000000e+00> : vector<4x256xf32>
    %15 = tpu.matmul %14, %13, %cst_10 {dimension_numbers = #tpu.dot_dimension_numbers<[1], [0], [0], [1], [0, 0, 1, 1], [], []>} : vector<4x32xf32>, vector<32x256xf32>, vector<4x256xf32> -> vector<4x256xf32>
    %c0_11 = arith.constant 0 : index
    %c0_12 = arith.constant 0 : index
    %16 = vector.load %arg5[%c0_11, %c0_12] : memref<4x1xf32, #tpu.memory_space<vmem>>, vector<4x1xf32>
    %17 = vector.broadcast %16 : vector<4x1xf32> to vector<4x256xf32>
    %18 = arith.addf %15, %17 : vector<4x256xf32>
    %c0_13 = arith.constant 0 : index
    %c0_14 = arith.constant 0 : index
    %19 = vector.load %arg6[%c0_13, %c0_14] : memref<4x256xf32, #tpu.memory_space<vmem>>, vector<4x256xf32>
    tpu.vector_store %arg6[%c0_13, %c0_14], %18 {strides = array<i32>} : memref<4x256xf32, #tpu.memory_space<vmem>>, vector<4x256xf32>,
    return
  }
  func.func @transform_0(%arg0: i32) -> (i32, i32) {
    %c0_i32 = arith.constant 0 : i32
    %c0_i32_0 = arith.constant 0 : i32
    return %c0_i32, %arg0 : i32, i32
  }
  func.func @transform_1(%arg0: i32) -> (i32, i32) {
    %c0_i32 = arith.constant 0 : i32
    %c0_i32_0 = arith.constant 0 : i32
    %c0_i32_1 = arith.constant 0 : i32
    return %c0_i32, %c0_i32_0 : i32, i32
  }
  func.func @transform_2(%arg0: i32) -> (i32, i32) {
    %c0_i32 = arith.constant 0 : i32
    %c0_i32_0 = arith.constant 0 : i32
    %c0_i32_1 = arith.constant 0 : i32
    return %c0_i32, %c0_i32_0 : i32, i32
  }
  func.func @transform_3(%arg0: i32) -> (i32, i32) {
    %c0_i32 = arith.constant 0 : i32
    %c0_i32_0 = arith.constant 0 : i32
    %c0_i32_1 = arith.constant 0 : i32
    return %c0_i32, %c0_i32_0 : i32, i32
  }
  func.func @transform_4(%arg0: i32) -> (i32, i32) {
    %c0_i32 = arith.constant 0 : i32
    %c0_i32_0 = arith.constant 0 : i32
    %c0_i32_1 = arith.constant 0 : i32
    return %c0_i32, %c0_i32_0 : i32, i32
  }
  func.func @transform_5(%arg0: i32) -> (i32, i32) {
    %c0_i32 = arith.constant 0 : i32
    %c0_i32_0 = arith.constant 0 : i32
    return %c0_i32, %arg0 : i32, i32
  }
}

</mosaic_0001>

<llo_original>
// kernel: tpu_custom_call.1
$region0: #{tpu_custom_call.1}
  #allocation0 [shape = 'u32[]', space=smem, size = 0x4, offset = 0x4, fixed_abs, tag = 'smem constant byte address 0x4 - core index']
  #allocation1 [shape = 'u32[144,128]{1,0:T(1,128)}', space=vmem, size = 0x12000, scoped, tag = 'internal scratch']
  %s0 = inlined_call_operand.hbm [shape: f32[4,512], index: 0, kind: input, shape index: {}]
  %s1 = inlined_call_operand.hbm [shape: f32[32,4], index: 1, kind: input, shape index: {}]
  %s2 = inlined_call_operand.hbm [shape: f32[32,1], index: 2, kind: input, shape index: {}]
  %s3 = inlined_call_operand.hbm [shape: f32[4,32], index: 3, kind: input, shape index: {}]
  %s4 = inlined_call_operand.hbm [shape: f32[4,1], index: 4, kind: input, shape index: {}]
  %s5 = inlined_call_operand.hbm [shape: f32[4,512], index: 5, kind: output, shape index: {}]
  %s6 = sld [smem:[#allocation0]]
  $region73: #{tpu_custom_call.1} parent=0
    _
  %s8 = ssub.s32 1, %s6
  %s9 = scalar_select 0, %s8, %s6
  $region1: #{tpu_custom_call.1} parent=0
    #allocation2 [shape = 'u8[8192]{0}', space=vmem, size = 0x2000, scoped, tag = 'input window, operand 0']
    #allocation3 [shape = 's32[2]{0}', space=sflag, size = 0x8, scoped, tag = 'scoped memory for tpu_custom_call.1']
    #allocation4 [shape = 's32[2]{0}', space=sflag, size = 0x8, scoped, tag = 'scoped memory for tpu_custom_call.1']
    #allocation5 [shape = 'u8[16384]{0}', space=vmem, size = 0x4000, scoped, tag = 'input window, operand 1, single buffered']
    #allocation6 [shape = 's32[1]{0}', space=sflag, size = 0x4, scoped, tag = 'scoped memory for tpu_custom_call.1']
    #allocation7 [shape = 'u8[16384]{0}', space=vmem, size = 0x4000, scoped, tag = 'input window, operand 2, single buffered']
    #allocation8 [shape = 'u8[2048]{0}', space=vmem, size = 0x800, scoped, tag = 'input window, operand 3, single buffered']
    #allocation9 [shape = 's32[1]{0}', space=sflag, size = 0x4, scoped, tag = 'scoped memory for tpu_custom_call.1']
    #allocation10 [shape = 'u8[2048]{0}', space=vmem, size = 0x800, scoped, tag = 'input window, operand 4, single buffered']
    #allocation11 [shape = 'u8[8192]{0}', space=vmem, size = 0x2000, scoped, tag = 'output window, operand 0']
    %10 = vsyncpa [#allocation3], 0
    %s11 = scalar_lea.sflag [#allocation3], 1
    %12 = vsyncpa %s11, 0
    %13 = vsyncpa [#allocation6], 0
    %14 = vsyncpa [#allocation9], 0
    %15 = vsyncpa [#allocation4], 0
    %s16 = scalar_lea.sflag [#allocation4], 1
    %17 = vsyncpa %s16, 0
    loop: start=0, step=1, limit=4
    $region2: #{tpu_custom_call.1} parent=1 // loop_pre_header
      _
    $region3: #{tpu_custom_call.1} parent=1 // loop_header
      %s19 = sphi 0, %s23
      %p20 = scmp.ge.s32.totalorder %s19, 4
      %s29 = sphi 0, %s31
      %s32 = sphi 0, %s29
      %s33 = sphi 0, %s32
      %s49 = sphi 0, %s33
      %s53 = sphi 0, %s53
      %s55 = sphi 0, %s53
      %s56 = sphi 0, %s55
      %s70 = sphi 0, %s56
      %s74 = sphi 0, %s74
      %s76 = sphi 0, %s74
      %s77 = sphi 0, %s76
      %s91 = sphi 0, %s77
      %s95 = sphi 0, %s95
      %s97 = sphi 0, %s95
      %s98 = sphi 0, %s97
      %s112 = sphi 0, %s98
      %s116 = sphi 0, %s116
      %s118 = sphi 0, %s116
      %s119 = sphi 0, %s118
      %s133 = sphi 0, %s119
      %s139 = sphi 0, %s141
      %s142 = sphi 0, %s139
      %s143 = sphi 0, %s142
      %s159 = sphi 0, %s143
    $region4: #{tpu_custom_call.1} parent=1 // loop_header_branch
      %22 = sbr.rel (%p20) target = $region8
    $region5: #{tpu_custom_call.1} parent=1 // loop_body
      %s24 = ssub.s32 %s19, 1
      %s25 = ssub.s32 %s19, 2
      %s26 = sadd.s32 %s19, 1
      %s27 = ssub.s32 %s19, %s26
      %p28 = scmp.eq.s32.totalorder %s27, 0
      %s30 = sadd.s32 %s29, 1
      %s31 = scalar_select %p28, %s29, %s30
      %p34 = pneg %p28
      %p35 = scmp.eq.s32.totalorder %s19, 1
      %p36 = por %p34, %p35
      %p37 = scmp.ne.s32.totalorder %s29, %s32
      %p38 = scmp.eq.s32.totalorder %s19, 0
      %p39 = por %p37, %p38
      %p40 = scmp.ne.s32.totalorder %s29, %s32
      %p41 = scmp.eq.s32.totalorder %s24, 1
      %p42 = por %p40, %p41
      %p43 = scmp.ne.s32.totalorder %s32, %s33
      %p44 = scmp.eq.s32.totalorder %s24, 0
      %p45 = por %p43, %p44
      %p46 = scmp.ne.s32.totalorder %s32, %s33
      %p47 = scmp.eq.s32.totalorder %s25, 1
      %p48 = por %p46, %p47
      %p50 = scmp.ne.s32.totalorder %s33, %s49
      %p51 = scmp.eq.s32.totalorder %s25, 0
      %p52 = por %p50, %p51
      %s54 = sadd.s32 %s53, 1
      %p57 = scmp.eq.s32.totalorder %s19, 1
      %p58 = scmp.ne.s32.totalorder %s53, %s55
      %p59 = scmp.eq.s32.totalorder %s19, 0
      %p60 = por %p58, %p59
      %p61 = scmp.ne.s32.totalorder %s53, %s55
      %p62 = scmp.eq.s32.totalorder %s24, 1
      %p63 = por %p61, %p62
      %p64 = scmp.ne.s32.totalorder %s55, %s56
      %p65 = scmp.eq.s32.totalorder %s24, 0
      %p66 = por %p64, %p65
      %p67 = scmp.ne.s32.totalorder %s55, %s56
      %p68 = scmp.eq.s32.totalorder %s25, 1
      %p69 = por %p67, %p68
      %p71 = scmp.ne.s32.totalorder %s56, %s70
      %p72 = scmp.eq.s32.totalorder %s25, 0
      %p73 = por %p71, %p72
      %s75 = sadd.s32 %s74, 1
      %p78 = scmp.eq.s32.totalorder %s19, 1
      %p79 = scmp.ne.s32.totalorder %s74, %s76
      %p80 = scmp.eq.s32.totalorder %s19, 0
      %p81 = por %p79, %p80
      %p82 = scmp.ne.s32.totalorder %s74, %s76
      %p83 = scmp.eq.s32.totalorder %s24, 1
      %p84 = por %p82, %p83
      %p85 = scmp.ne.s32.totalorder %s76, %s77
      %p86 = scmp.eq.s32.totalorder %s24, 0
      %p87 = por %p85, %p86
      %p88 = scmp.ne.s32.totalorder %s76, %s77
      %p89 = scmp.eq.s32.totalorder %s25, 1
      %p90 = por %p88, %p89
      %p92 = scmp.ne.s32.totalorder %s77, %s91
      %p93 = scmp.eq.s32.totalorder %s25, 0
      %p94 = por %p92, %p93
      %s96 = sadd.s32 %s95, 1
      %p99 = scmp.eq.s32.totalorder %s19, 1
      %p100 = scmp.ne.s32.totalorder %s95, %s97
      %p101 = scmp.eq.s32.totalorder %s19, 0
      %p102 = por %p100, %p101
      %p103 = scmp.ne.s32.totalorder %s95, %s97
      %p104 = scmp.eq.s32.totalorder %s24, 1
      %p105 = por %p103, %p104
      %p106 = scmp.ne.s32.totalorder %s97, %s98
      %p107 = scmp.eq.s32.totalorder %s24, 0
      %p108 = por %p106, %p107
      %p109 = scmp.ne.s32.totalorder %s97, %s98
      %p110 = scmp.eq.s32.totalorder %s25, 1
      %p111 = por %p109, %p110
      %p113 = scmp.ne.s32.totalorder %s98, %s112
      %p114 = scmp.eq.s32.totalorder %s25, 0
      %p115 = por %p113, %p114
      %s117 = sadd.s32 %s116, 1
      %p120 = scmp.eq.s32.totalorder %s19, 1
      %p121 = scmp.ne.s32.totalorder %s116, %s118
      %p122 = scmp.eq.s32.totalorder %s19, 0
      %p123 = por %p121, %p122
      %p124 = scmp.ne.s32.totalorder %s116, %s118
      %p125 = scmp.eq.s32.totalorder %s24, 1
      %p126 = por %p124, %p125
      %p127 = scmp.ne.s32.totalorder %s118, %s119
      %p128 = scmp.eq.s32.totalorder %s24, 0
      %p129 = por %p127, %p128
      %p130 = scmp.ne.s32.totalorder %s118, %s119
      %p131 = scmp.eq.s32.totalorder %s25, 1
      %p132 = por %p130, %p131
      %p134 = scmp.ne.s32.totalorder %s119, %s133
      %p135 = scmp.eq.s32.totalorder %s25, 0
      %p136 = por %p134, %p135
      %s137 = ssub.s32 %s19, %s26
      %p138 = scmp.eq.s32.totalorder %s137, 0
      %s140 = sadd.s32 %s139, 1
      %s141 = scalar_select %p138, %s139, %s140
      %p144 = pneg %p138
      %p145 = scmp.eq.s32.totalorder %s19, 1
      %p146 = por %p144, %p145
      %p147 = scmp.ne.s32.totalorder %s139, %s142
      %p148 = scmp.eq.s32.totalorder %s19, 0
      %p149 = por %p147, %p148
      %p150 = scmp.ne.s32.totalorder %s139, %s142
      %p151 = scmp.eq.s32.totalorder %s24, 1
      %p152 = por %p150, %p151
      %p153 = scmp.ne.s32.totalorder %s142, %s143
      %p154 = scmp.eq.s32.totalorder %s24, 0
      %p155 = por %p153, %p154
      %p156 = scmp.ne.s32.totalorder %s142, %s143
      %p157 = scmp.eq.s32.totalorder %s25, 1
      %p158 = por %p156, %p157
      %p160 = scmp.ne.s32.totalorder %s143, %s159
      %p161 = scmp.eq.s32.totalorder %s25, 0
      %p162 = por %p160, %p161
      %p163 = scmp.le.s32.totalorder 1, %s19
      %p164 = scmp.lt.s32.totalorder %s19, 3
      %p165 = pnand %p163, %p164
      %p166 = pneg %p165
      // Predicated region
      $region9: #{tpu_custom_call.1} parent=5 // pred_check
        _
      $region10: #{tpu_custom_call.1} parent=5 // pred_check_branch
        %168 = sbr.rel (%p165) target = $region12
      $region11: #{tpu_custom_call.1} parent=5 // pred_region
        %s169 = ssub.s32 %s19, 1
        // Predicated region
        $region13: #{tpu_custom_call.1} parent=11 // pred_check
          %p170 = pneg %p66
        $region14: #{tpu_custom_call.1} parent=11 // pred_check_branch
          %172 = sbr.rel (%p170) target = $region16
        $region15: #{tpu_custom_call.1} parent=11 // pred_region
          %s174 = ssub.s32 512, 512
          %175 = vsyncadd [#allocation6], %s174
          %s176 = sshll.u32 [#allocation5], 4
          %s177 = int_to_ptr.vmem [resolvable:$true] %s176
          %182 = dma.hbm_to_vmem [thread:$0]  %s1, 512, %s177, [#allocation6], 128, 128, 8
        $region16: #{tpu_custom_call.1} parent=11 // pred_fallthru
          _
        // Predicated region
        $region17: #{tpu_custom_call.1} parent=11 // pred_check
          %p183 = pneg %p87
        $region18: #{tpu_custom_call.1} parent=11 // pred_check_branch
          %185 = sbr.rel (%p183) target = $region20
        $region19: #{tpu_custom_call.1} parent=11 // pred_region
          %s187 = ssub.s32 512, 512
          %188 = vsyncadd [#allocation6], %s187
          %s189 = sshll.u32 [#allocation7], 4
          %s190 = int_to_ptr.vmem [resolvable:$true] %s189
          %195 = dma.hbm_to_vmem [thread:$0]  %s2, 512, %s190, [#allocation6], 128, 128, 8
        $region20: #{tpu_custom_call.1} parent=11 // pred_fallthru
          _
        // Predicated region
        $region21: #{tpu_custom_call.1} parent=11 // pred_check
          %p196 = pneg %p108
        $region22: #{tpu_custom_call.1} parent=11 // pred_check_branch
          %198 = sbr.rel (%p196) target = $region24
        $region23: #{tpu_custom_call.1} parent=11 // pred_region
          %s200 = ssub.s32 64, 64
          %201 = vsyncadd [#allocation9], %s200
          %s203 = sshll.u32 [#allocation8], 4
          %s204 = int_to_ptr.vmem [resolvable:$true] %s203
          %206 = dma.hbm_to_vmem [thread:$0]  %s3, 64, %s204, [#allocation9]
        $region24: #{tpu_custom_call.1} parent=11 // pred_fallthru
          _
        // Predicated region
        $region25: #{tpu_custom_call.1} parent=11 // pred_check
          %p207 = pneg %p129
        $region26: #{tpu_custom_call.1} parent=11 // pred_check_branch
          %209 = sbr.rel (%p207) target = $region28
        $region27: #{tpu_custom_call.1} parent=11 // pred_region
          %s211 = ssub.s32 64, 64
          %212 = vsyncadd [#allocation9], %s211
          %s214 = sshll.u32 [#allocation10], 4
          %s215 = int_to_ptr.vmem [resolvable:$true] %s214
          %217 = dma.hbm_to_vmem [thread:$0]  %s4, 64, %s215, [#allocation9]
        $region28: #{tpu_custom_call.1} parent=11 // pred_fallthru
          _
      $region12: #{tpu_custom_call.1} parent=5 // pred_fallthru
        _
      %p218 = scmp.lt.s32.totalorder %s19, 2
      // Predicated region
      $region29: #{tpu_custom_call.1} parent=5 // pred_check
        %p219 = pneg %p218
      $region30: #{tpu_custom_call.1} parent=5 // pred_check_branch
        %221 = sbr.rel (%p219) target = $region32
      $region31: #{tpu_custom_call.1} parent=5 // pred_region
        // Predicated region
        $region33: #{tpu_custom_call.1} parent=31 // pred_check
          %p222 = pneg %p39
        $region34: #{tpu_custom_call.1} parent=31 // pred_check_branch
          %224 = sbr.rel (%p222) target = $region36
        $region35: #{tpu_custom_call.1} parent=31 // pred_region
          %s225 = sand.u32 %s29, 1
          %s226 = scalar_lea.sflag [#allocation3], %s225
          %s227 = sand.u32 %s29, 1
          %s228 = smul.addr %s227, 8
          %s229 = scalar_lea.vmem [#allocation2], %s228
          %s230 = smul.u32 2, %s19
          %s232 = ssub.s32 128, 128
          %233 = vsyncadd %s226, %s232
          %s234 = smul.addr %s230, 64
          %s235 = scalar_lea.hbm %s0, %s234
          %s237 = sshll.u32 %s229, 4
          %s238 = int_to_ptr.vmem [resolvable:$true] %s237
          %240 = dma.hbm_to_vmem [thread:$0]  %s235, 128, %s238, %s226
        $region36: #{tpu_custom_call.1} parent=31 // pred_fallthru
          _
      $region32: #{tpu_custom_call.1} parent=5 // pred_fallthru
        _
      %p241 = scmp.le.s32.totalorder 1, %s19
      %p242 = scmp.lt.s32.totalorder %s19, 3
      %p243 = pnand %p241, %p242
      %p244 = pneg %p243
      // Predicated region
      $region37: #{tpu_custom_call.1} parent=5 // pred_check
        _
      $region38: #{tpu_custom_call.1} parent=5 // pred_check_branch
        %246 = sbr.rel (%p243) target = $region40
      $region39: #{tpu_custom_call.1} parent=5 // pred_region
        %s247 = ssub.s32 %s19, 1
        %s248 = sand.u32 %s32, 1
        %s249 = scalar_lea.sflag [#allocation3], %s248
        %s250 = sand.u32 %s32, 1
        %s251 = smul.addr %s250, 8
        %s252 = scalar_lea.vmem [#allocation2], %s251
        // Predicated region
        $region41: #{tpu_custom_call.1} parent=39 // pred_check
          %p253 = pneg %p45
        $region42: #{tpu_custom_call.1} parent=39 // pred_check_branch
          %255 = sbr.rel (%p253) target = $region44
        $region43: #{tpu_custom_call.1} parent=39 // pred_region
          %256 = dma.done %s249, 128
        $region44: #{tpu_custom_call.1} parent=39 // pred_fallthru
          _
        // Predicated region
        $region45: #{tpu_custom_call.1} parent=39 // pred_check
          %p257 = pneg %p66
        $region46: #{tpu_custom_call.1} parent=39 // pred_check_branch
          %259 = sbr.rel (%p257) target = $region48
        $region47: #{tpu_custom_call.1} parent=39 // pred_region
          %260 = dma.done [#allocation6], 512
        $region48: #{tpu_custom_call.1} parent=39 // pred_fallthru
          _
        // Predicated region
        $region49: #{tpu_custom_call.1} parent=39 // pred_check
          %p261 = pneg %p87
        $region50: #{tpu_custom_call.1} parent=39 // pred_check_branch
          %263 = sbr.rel (%p261) target = $region52
        $region51: #{tpu_custom_call.1} parent=39 // pred_region
          %264 = dma.done [#allocation6], 512
        $region52: #{tpu_custom_call.1} parent=39 // pred_fallthru
          _
        // Predicated region
        $region53: #{tpu_custom_call.1} parent=39 // pred_check
          %p265 = pneg %p108
        $region54: #{tpu_custom_call.1} parent=39 // pred_check_branch
          %267 = sbr.rel (%p265) target = $region56
        $region55: #{tpu_custom_call.1} parent=39 // pred_region
          %268 = dma.done [#allocation9], 64
        $region56: #{tpu_custom_call.1} parent=39 // pred_fallthru
          _
        // Predicated region
        $region57: #{tpu_custom_call.1} parent=39 // pred_check
          %p269 = pneg %p129
        $region58: #{tpu_custom_call.1} parent=39 // pred_check_branch
          %271 = sbr.rel (%p269) target = $region60
        $region59: #{tpu_custom_call.1} parent=39 // pred_region
          %272 = dma.done [#allocation9], 64
        $region60: #{tpu_custom_call.1} parent=39 // pred_fallthru
          _
        %s273 = sand.u32 %s32, 1
        %s274 = scalar_lea.sflag [#allocation3], %s273
        %s275 = sand.u32 %s32, 1
        %s276 = smul.addr %s275, 8
        %s277 = scalar_lea.vmem [#allocation2], %s276
        %p278 = pneg %p45
        %p279 = pneg %p42
        %p280 = pneg %p66
        %p281 = pneg %p63
        %p282 = pneg %p87
        %p283 = pneg %p84
        %p284 = pneg %p108
        %p285 = pneg %p105
        %p286 = pneg %p129
        %p287 = pneg %p126
        %p288 = pneg %p155
        %p289 = pneg %p152
        %s290 = sand.u32 %s142, 1
        %s291 = scalar_lea.sflag [#allocation4], %s290
        %s292 = sand.u32 %s142, 1
        %s293 = smul.addr %s292, 8
        %s294 = scalar_lea.vmem [#allocation11], %s293
        %s295 = smul.u32 2, %s24
        %s296 = smul.u32 2, %s24
        %v297 = vld [vmem:[#allocation5] sm:$0xff]
        %v298 = vld [vmem:[#allocation5 + $0x8] sm:$0xff]
        %v299 = vld [vmem:[#allocation5 + $0x10] sm:$0xff]
        %v300 = vld [vmem:[#allocation5 + $0x18] sm:$0xff]
        %v301 = vld [vmem:[%s252] sm:$0xff]
        %v302 = vld [vmem:[#allocation7] sm:$0xff]
        %v303 = vld [vmem:[#allocation7 + $0x8] sm:$0xff]
        %v304 = vld [vmem:[#allocation7 + $0x10] sm:$0xff]
        %v305 = vld [vmem:[#allocation7 + $0x18] sm:$0xff]
        %307 = vset.pattern.permute.xlu0 0
        %308 = vperm.xlu0 %307, %v302
        %v309 = vpop.permute.xlu0 %308
        %312 = vset.pattern.permute.xlu0 0
        %313 = vperm.xlu0 %312, %v303
        %v314 = vpop.permute.xlu0 %313
        %317 = vset.pattern.permute.xlu0 0
        %318 = vperm.xlu0 %317, %v304
        %v319 = vpop.permute.xlu0 %318
        %322 = vset.pattern.permute.xlu0 0
        %323 = vperm.xlu0 %322, %v305
        %v324 = vpop.permute.xlu0 %323
        %v327 = vcombine.high %v301, %v301
        %vm328 = vcmask 31744
        %v330 = vsel %vm328, %v297, 0
        %v333 = vsel %vm328, %v298, 0
        %v336 = vsel %vm328, %v299, 0
        %v339 = vsel %vm328, %v300, 0
        %vm341 = vcmask 1043456
        %v342 = vsel %vm341, %v301, 0
        %v344 = vsel %vm341, %v327, 0
        %346 = vmatprep.subr.mxu0 %v344
        %347 = vmatpush1.msra.mxu0 %v342
        %348 = vmatprep.subr.mxu0 0.0
        %349 = vmatpush1.msra.mxu0 0.0
        %350 = vmatprep.subr.mxu0 0.0
        %351 = vmatpush1.msra.mxu0 0.0
        %352 = vmatprep.subr.mxu0 0.0
        %353 = vmatpush1.msra.mxu0 0.0
        %354 = vmatprep.subr.mxu0 0.0
        %355 = vmatpush1.msra.mxu0 0.0
        %356 = vmatprep.subr.mxu0 0.0
        %357 = vmatpush1.msra.mxu0 0.0
        %358 = vmatprep.subr.mxu0 0.0
        %359 = vmatpush1.msra.mxu0 0.0
        %360 = vmatprep.subr.mxu0 0.0
        %361 = vmatpush1.msra.mxu0 0.0
        %362 = vmatprep.subr.mxu0 0.0
        %363 = vmatpush1.msra.mxu0 0.0
        %364 = vmatprep.subr.mxu0 0.0
        %365 = vmatpush1.msra.mxu0 0.0
        %366 = vmatprep.subr.mxu0 0.0
        %367 = vmatpush1.msra.mxu0 0.0
        %368 = vmatprep.subr.mxu0 0.0
        %369 = vmatpush1.msra.mxu0 0.0
        %370 = vmatprep.subr.mxu0 0.0
        %371 = vmatpush1.msra.mxu0 0.0
        %372 = vmatprep.subr.mxu0 0.0
        %373 = vmatpush1.msra.mxu0 0.0
        %374 = vmatprep.subr.mxu0 0.0
        %375 = vmatpush1.msra.mxu0 0.0
        %376 = vmatprep.subr.mxu0 0.0
        %377 = vmatpush1.msra.mxu0 0.0
        %378 = vmatprep.subr.mxu0 0.0
        %379 = vmatpush1.msra.mxu0 0.0
        %380 = vmatprep.subr.mxu0 0.0
        %381 = vmatpush1.msra.mxu0 0.0
        %382 = vmatprep.subr.mxu0 0.0
        %383 = vmatpush1.msra.mxu0 0.0
        %384 = vmatprep.subr.mxu0 0.0
        %385 = vmatpush1.msra.mxu0 0.0
        %386 = vmatprep.subr.mxu0 0.0
        %387 = vmatpush1.msra.mxu0 0.0
        %388 = vmatprep.subr.mxu0 0.0
        %389 = vmatpush1.msra.mxu0 0.0
        %390 = vmatprep.subr.mxu0 0.0
        %391 = vmatpush1.msra.mxu0 0.0
        %392 = vmatprep.subr.mxu0 0.0
        %393 = vmatpush1.msra.mxu0 0.0
        %394 = vmatprep.subr.mxu0 0.0
        %395 = vmatpush1.msra.mxu0 0.0
        %396 = vmatprep.subr.mxu0 0.0
        %397 = vmatpush1.msra.mxu0 0.0
        %398 = vmatprep.subr.mxu0 0.0
        %399 = vmatpush1.msra.mxu0 0.0
        %400 = vmatprep.subr.mxu0 0.0
        %401 = vmatpush1.msra.mxu0 0.0
        %402 = vmatprep.subr.mxu0 0.0
        %403 = vmatpush1.msra.mxu0 0.0
        %404 = vmatprep.subr.mxu0 0.0
        %405 = vmatpush1.msra.mxu0 0.0
        %406 = vmatprep.subr.mxu0 0.0
        %407 = vmatpush1.msra.mxu0 0.0
        %408 = vmatprep.subr.mxu0 0.0
        %409 = vmatpush1.msra.mxu0 0.0
        %410 = vmatprep.mubr.f32.mxu0 0.0
        %411 = vmatmul.mubr.f32.gmra.mrb[0].mxu0 %v330
        %v412 = vpop.f32.mrb[0].mxu0
        %v413 = vadd.f32 %v309, %v412
        %v414 = vpop.f32.mrb[0].mxu0
        %v415 = vadd.f32 %v309, %v414
        %416 = vmatprep.mubr.f32.mxu0 0.0
        %417 = vmatmul.mubr.f32.gmra.mrb[0].mxu0 %v333
        %v418 = vpop.f32.mrb[0].mxu0
        %v419 = vadd.f32 %v314, %v418
        %v420 = vpop.f32.mrb[0].mxu0
        %v421 = vadd.f32 %v314, %v420
        %422 = vmatprep.mubr.f32.mxu0 0.0
        %423 = vmatmul.mubr.f32.gmra.mrb[0].mxu0 %v336
        %v424 = vpop.f32.mrb[0].mxu0
        %v425 = vadd.f32 %v319, %v424
        %v426 = vpop.f32.mrb[0].mxu0
        %v427 = vadd.f32 %v319, %v426
        %428 = vmatprep.mubr.f32.mxu0 0.0
        %429 = vmatmul.mubr.f32.gmra.mrb[0].mxu0 %v339
        %v430 = vpop.f32.mrb[0].mxu0
        %v431 = vadd.f32 %v324, %v430
        %v432 = vpop.f32.mrb[0].mxu0
        %v433 = vadd.f32 %v324, %v432
        %434 = vdwg.mxu0
        %v435 = vmul.f32 %v413, 0.5
        %v436 = vmul.f32 %v415, 0.5
        %v437 = vmul.f32 %v419, 0.5
        %v438 = vmul.f32 %v421, 0.5
        %v439 = vmul.f32 %v425, 0.5
        %v440 = vmul.f32 %v427, 0.5
        %v441 = vmul.f32 %v431, 0.5
        %v442 = vmul.f32 %v433, 0.5
        %v443 = vmul.f32 %v413, 0.70710677
        %v444 = vmul.f32 %v415, 0.70710677
        %v445 = vmul.f32 %v419, 0.70710677
        %v446 = vmul.f32 %v421, 0.70710677
        %v447 = vmul.f32 %v425, 0.70710677
        %v448 = vmul.f32 %v427, 0.70710677
        %v449 = vmul.f32 %v431, 0.70710677
        %v450 = vmul.f32 %v433, 0.70710677
        %v451 = verf.f32.pop %v443
        %v452 = verf.f32.pop %v444
        %v453 = verf.f32.pop %v445
        %v454 = verf.f32.pop %v446
        %v455 = verf.f32.pop %v447
        %v456 = verf.f32.pop %v448
        %v457 = verf.f32.pop %v449
        %v458 = verf.f32.pop %v450
        %v459 = vadd.f32 %v451, 1.0
        %v460 = vadd.f32 %v452, 1.0
        %v461 = vadd.f32 %v453, 1.0
        %v462 = vadd.f32 %v454, 1.0
        %v463 = vadd.f32 %v455, 1.0
        %v464 = vadd.f32 %v456, 1.0
        %v465 = vadd.f32 %v457, 1.0
        %v466 = vadd.f32 %v458, 1.0
        %v467 = vmul.f32 %v435, %v459
        %v468 = vmul.f32 %v436, %v460
        %v469 = vmul.f32 %v437, %v461
        %v470 = vmul.f32 %v438, %v462
        %v471 = vmul.f32 %v439, %v463
        %v472 = vmul.f32 %v440, %v464
        %v473 = vmul.f32 %v441, %v465
        %v474 = vmul.f32 %v442, %v466
        %v475 = vld [vmem:[#allocation8] sm:$0xf]
        %v476 = vld [vmem:[#allocation10] sm:$0xf]
        %478 = vset.pattern.permute.xlu0 0
        %479 = vperm.xlu0 %478, %v476
        %v480 = vpop.permute.xlu0 %479
        %vm482 = vcmask 261120
        %v484 = vsel %vm482, %v475, 0
        %486 = vmatprep.subr.mxu0 %v468
        %487 = vmatpush1.msra.mxu0 %v467
        %488 = vmatprep.subr.mxu0 %v470
        %489 = vmatpush1.msra.mxu0 %v469
        %490 = vmatprep.subr.mxu0 %v472
        %491 = vmatpush1.msra.mxu0 %v471
        %492 = vmatprep.subr.mxu0 %v474
        %493 = vmatpush1.msra.mxu0 %v473
        %494 = vmatprep.subr.mxu0 0.0
        %495 = vmatpush1.msra.mxu0 0.0
        %496 = vmatprep.subr.mxu0 0.0
        %497 = vmatpush1.msra.mxu0 0.0
        %498 = vmatprep.subr.mxu0 0.0
        %499 = vmatpush1.msra.mxu0 0.0
        %500 = vmatprep.subr.mxu0 0.0
        %501 = vmatpush1.msra.mxu0 0.0
        %502 = vmatprep.subr.mxu0 0.0
        %503 = vmatpush1.msra.mxu0 0.0
        %504 = vmatprep.subr.mxu0 0.0
        %505 = vmatpush1.msra.mxu0 0.0
        %506 = vmatprep.subr.mxu0 0.0
        %507 = vmatpush1.msra.mxu0 0.0
        %508 = vmatprep.subr.mxu0 0.0
        %509 = vmatpush1.msra.mxu0 0.0
        %510 = vmatprep.subr.mxu0 0.0
        %511 = vmatpush1.msra.mxu0 0.0
        %512 = vmatprep.subr.mxu0 0.0
        %513 = vmatpush1.msra.mxu0 0.0
        %514 = vmatprep.subr.mxu0 0.0
        %515 = vmatpush1.msra.mxu0 0.0
        %516 = vmatprep.subr.mxu0 0.0
        %517 = vmatpush1.msra.mxu0 0.0
        %518 = vmatprep.subr.mxu0 0.0
        %519 = vmatpush1.msra.mxu0 0.0
        %520 = vmatprep.subr.mxu0 0.0
        %521 = vmatpush1.msra.mxu0 0.0
        %522 = vmatprep.subr.mxu0 0.0
        %523 = vmatpush1.msra.mxu0 0.0
        %524 = vmatprep.subr.mxu0 0.0
        %525 = vmatpush1.msra.mxu0 0.0
        %526 = vmatprep.subr.mxu0 0.0
        %527 = vmatpush1.msra.mxu0 0.0
        %528 = vmatprep.subr.mxu0 0.0
        %529 = vmatpush1.msra.mxu0 0.0
        %530 = vmatprep.subr.mxu0 0.0
        %531 = vmatpush1.msra.mxu0 0.0
        %532 = vmatprep.subr.mxu0 0.0
        %533 = vmatpush1.msra.mxu0 0.0
        %534 = vmatprep.subr.mxu0 0.0
        %535 = vmatpush1.msra.mxu0 0.0
        %536 = vmatprep.subr.mxu0 0.0
        %537 = vmatpush1.msra.mxu0 0.0
        %538 = vmatprep.subr.mxu0 0.0
        %539 = vmatpush1.msra.mxu0 0.0
        %540 = vmatprep.subr.mxu0 0.0
        %541 = vmatpush1.msra.mxu0 0.0
        %542 = vmatprep.subr.mxu0 0.0
        %543 = vmatpush1.msra.mxu0 0.0
        %544 = vmatprep.subr.mxu0 0.0
        %545 = vmatpush1.msra.mxu0 0.0
        %546 = vmatprep.subr.mxu0 0.0
        %547 = vmatpush1.msra.mxu0 0.0
        %548 = vmatprep.subr.mxu0 0.0
        %549 = vmatpush1.msra.mxu0 0.0
        %550 = vmatprep.mubr.f32.mxu0 0.0
        %551 = vmatmul.mubr.f32.gmra.mrb[0].mxu0 %v484
        %v552 = vpop.f32.mrb[0].mxu0
        %v553 = vadd.f32 %v480, %v552
        %v554 = vpop.f32.mrb[0].mxu0
        %v555 = vadd.f32 %v480, %v554
        %556 = vdwg.mxu0
        %v559 = vcombine.low %v553, %v555
        %561 = vst [vmem:[%s294] sm:$0xff] %v559
        %s562 = sand.u32 %s142, 1
        %s563 = scalar_lea.sflag [#allocation4], %s562
        %s564 = sand.u32 %s142, 1
        %s565 = smul.addr %s564, 8
        %s566 = scalar_lea.vmem [#allocation11], %s565
        // Predicated region
        $region61: #{tpu_custom_call.1} parent=39 // pred_check
          %p567 = pneg %p152
        $region62: #{tpu_custom_call.1} parent=39 // pred_check_branch
          %569 = sbr.rel (%p567) target = $region64
        $region63: #{tpu_custom_call.1} parent=39 // pred_region
          %s570 = smul.u32 2, %s24
          %s572 = ssub.s32 128, 128
          %573 = vsyncadd %s563, %s572
          %s574 = smul.addr %s570, 64
          %s575 = scalar_lea.hbm %s5, %s574
          %s577 = sshll.u32 %s566, 4
          %s578 = int_to_ptr.vmem [resolvable:$true] %s577
          %580 = dma.vmem_to_hbm [thread:$0]  %s578, 128, %s575, %s563
        $region64: #{tpu_custom_call.1} parent=39 // pred_fallthru
          _
      $region40: #{tpu_custom_call.1} parent=5 // pred_fallthru
        _
      %p581 = scmp.le.s32.totalorder 2, %s19
      // Predicated region
      $region65: #{tpu_custom_call.1} parent=5 // pred_check
        %p582 = pneg %p581
      $region66: #{tpu_custom_call.1} parent=5 // pred_check_branch
        %584 = sbr.rel (%p582) target = $region68
      $region67: #{tpu_custom_call.1} parent=5 // pred_region
        %s585 = ssub.s32 %s19, 2
        // Predicated region
        $region69: #{tpu_custom_call.1} parent=67 // pred_check
          %p586 = pneg %p158
        $region70: #{tpu_custom_call.1} parent=67 // pred_check_branch
          %588 = sbr.rel (%p586) target = $region72
        $region71: #{tpu_custom_call.1} parent=67 // pred_region
          %s589 = sand.u32 %s143, 1
          %s590 = scalar_lea.sflag [#allocation4], %s589
          %s591 = sand.u32 %s143, 1
          %s592 = smul.addr %s591, 8
          %s593 = scalar_lea.vmem [#allocation11], %s592
          %594 = dma.done %s590, 128
        $region72: #{tpu_custom_call.1} parent=67 // pred_fallthru
          _
      $region68: #{tpu_custom_call.1} parent=5 // pred_fallthru
        _
    $region6: #{tpu_custom_call.1} parent=1 // loop_footer
      %s23 = sadd.s32 1, %s19
    $region7: #{tpu_custom_call.1} parent=1 // loop_footer_branch
      %18 = sbr.rel target = $region3
    $region8: #{tpu_custom_call.1} parent=1 // loop_exit
      _
    %595 = vsyncpa [#allocation3], 1
    %s596 = scalar_lea.sflag [#allocation3], 1
    %597 = vsyncpa %s596, 1
    %598 = vsyncpa [#allocation6], 1
    %599 = vsyncpa [#allocation9], 1
    %600 = vsyncpa [#allocation4], 1
    %s601 = scalar_lea.sflag [#allocation4], 1
    %602 = vsyncpa %s601, 1

</llo_original>
